<compile_context>
chip_gen: v7x
topology: tpu7x:2x2x1
jax: 0.10.0
libtpu: 0.0.40
codegen_flags: <defaults>
</compile_context>

<pallas_src>
import functools

import jax
import jax.numpy as jnp
from jax.experimental import pallas as pl
from jax.experimental.pallas import tpu as pltpu

_EPS = 1e-5


def _dice_partial_kernel(p_ref, g_ref, inter_ref, union_ref,
                         inter_acc, union_acc,
                         *, apply_sigmoid, n_valid, tile, n_s, needs_mask):
    j = pl.program_id(1)                      # spatial tile (reduction axis)

    @pl.when(j == 0)
    def _():
        inter_acc[...] = jnp.zeros_like(inter_acc)
        union_acc[...] = jnp.zeros_like(union_acc)

    p = p_ref[...].astype(jnp.float32)
    g = g_ref[...].astype(jnp.float32)
    prob = jax.nn.sigmoid(p) if apply_sigmoid else p

    if needs_mask:
        # Zero out columns past the true spatial extent (ragged last tile, or
        # tiles that fall entirely past S when the parallel split is uneven).
        start = (pl.program_id(0) * n_s + j) * tile
        col = jax.lax.broadcasted_iota(jnp.int32, prob.shape, 1)
        valid = col < (n_valid - start)
        prob = jnp.where(valid, prob, 0.0)
        g = jnp.where(valid, g, 0.0)

    # Lane-wide partial sums on the VPU; single cross-lane reduce at the end.
    inter_acc[...] += prob * g
    union_acc[...] += prob * prob + g * g

    @pl.when(j == pl.num_programs(1) - 1)
    def _():
        inter_ref[0] = jnp.sum(inter_acc[...], axis=-1, keepdims=True)
        union_ref[0] = jnp.sum(union_acc[...], axis=-1, keepdims=True)


def _vmem_budget_bytes():
    """Half of this generation's VMEM (64 MiB on v5e/v6e, 32 MiB on v7x)."""
    cap = None
    try:
        info = pltpu.get_tpu_info()
        cap = getattr(info, "vmem_capacity_bytes", None)
    except Exception:
        cap = None
    if not cap:
        cap = 64 * 1024 * 1024        # conservative fallback (v7x physical)
    return min(cap // 2, 64 * 1024 * 1024)


def dice_loss(predict, gt, activation="sigmoid", is_average=True):
    """Matches DiceLoss(dims=[2,3,4]).forward(predict, gt, activation, is_average)."""
    N, C = predict.shape[0], predict.shape[1]
    S = 1
    for d in predict.shape[2:]:
        S *= d
    R = N * C

    if activation == "softmax":
        # Channel-dim softmax is orthogonal to the row-wise spatial reduction;
        # keep it as plain-JAX (f32) glue.
        # TODO(synk): fuse channel-dim softmax into the kernel with an
        # (N, C, S-tile) layout to save this extra HBM round trip.
        prob_in = jax.nn.softmax(predict.astype(jnp.float32), axis=1)
        apply_sigmoid = False
    else:  # 'sigmoid' (default)
        prob_in = predict            # native dtype; cast + sigmoid in-kernel
        apply_sigmoid = True

    p2 = prob_in.reshape(R, S)       # contiguous collapse: no HBM copy
    g2 = gt.reshape(R, S)

    # --- generation-aware tile sizing --------------------------------------
    in_bytes = jnp.dtype(p2.dtype).itemsize + jnp.dtype(g2.dtype).itemsize
    # Per lane-column VMEM cost per row: 2 pipeline buffers for each input,
    # 2 f32 lane-wide accumulators, ~6 f32 worth of in-kernel temporaries.
    per_col = R * (2 * in_bytes + 2 * 4 + 6 * 4)
    budget = _vmem_budget_bytes()
    max_tile = max(128, (budget // per_col) // 128 * 128)
    s_ceil = ((S + 127) // 128) * 128
    tile = max(128, min(max_tile, 32768, s_ceil))

    n_tiles = pl.cdiv(S, tile)
    P = 2 if n_tiles > 1 else 1      # leading parallel axis (both v7x TCs)
    n_s = pl.cdiv(n_tiles, P)
    needs_mask = (P * n_s * tile) != S

    kernel = functools.partial(
        _dice_partial_kernel, apply_sigmoid=apply_sigmoid, n_valid=S,
        tile=tile, n_s=n_s, needs_mask=needs_mask)

    inter_p, union_p = pl.pallas_call(
        kernel,
        out_shape=(jax.ShapeDtypeStruct((P, R, 1), jnp.float32),
                   jax.ShapeDtypeStruct((P, R, 1), jnp.float32)),
        grid_spec=pltpu.PrefetchScalarGridSpec(
            num_scalar_prefetch=0,
            grid=(P, n_s),
            in_specs=[
                pl.BlockSpec((R, tile), lambda p, j: (0, p * n_s + j)),
                pl.BlockSpec((R, tile), lambda p, j: (0, p * n_s + j)),
            ],
            out_specs=[
                pl.BlockSpec((1, R, 1), lambda p, j: (p, 0, 0)),
                pl.BlockSpec((1, R, 1), lambda p, j: (p, 0, 0)),
            ],
            scratch_shapes=[
                pltpu.VMEM((R, tile), jnp.float32),
                pltpu.VMEM((R, tile), jnp.float32),
            ],
        ),
        compiler_params=pltpu.CompilerParams(
            dimension_semantics=("parallel", "arbitrary"),
            vmem_limit_bytes=int(budget)),
    )(p2, g2)

    # Tiny epilogue: combine parallel partials, dice ratio, mean over (N, C).
    inter = jnp.sum(inter_p[:, :, 0], axis=0)       # (R,)
    union = jnp.sum(union_p[:, :, 0], axis=0)
    dice = (2.0 * inter + _EPS) / (union + _EPS)
    per_batch = 1.0 - jnp.mean(dice.reshape(N, C), axis=1)
    return jnp.mean(per_batch) if is_average else jnp.sum(per_batch)


def _reference_dice_loss(predict, gt, activation="sigmoid", is_average=True):
    predict = predict.astype(jnp.float32)
    gt = gt.astype(jnp.float32)
    if activation == "softmax":
        prob = jax.nn.softmax(predict, axis=1)
    else:
        prob = jax.nn.sigmoid(predict)
    dims = tuple(range(2, predict.ndim))
    inter = jnp.sum(prob * gt, axis=dims)
    union = jnp.sum(prob * prob, axis=dims) + jnp.sum(gt * gt, axis=dims)
    dice = (2.0 * inter + _EPS) / (union + _EPS)
    per_batch = 1.0 - jnp.mean(dice, axis=1)
    return jnp.mean(per_batch) if is_average else jnp.sum(per_batch)


if __name__ == "__main__":
    key = jax.random.PRNGKey(0)
    k1, k2, k3, k4 = jax.random.split(key, 4)

    # Case 1: f32 inputs, spatial size multiple of 128 (no tail mask).
    N, C, D, H, W = 2, 4, 4, 8, 8
    predict = jax.random.normal(k1, (N, C, D, H, W), dtype=jnp.float32)
    gt = (jax.random.uniform(k2, (N, C, D, H, W)) > 0.5).astype(jnp.float32)
    out = jax.block_until_ready(dice_loss(predict, gt, "sigmoid", True))
    ref = _reference_dice_loss(predict, gt, "sigmoid", True)
    assert jnp.allclose(out, ref, atol=1e-5, rtol=1e-4), (out, ref)

    # Case 2: bf16 inputs with ragged spatial extent (native-dtype path +
    # in-kernel tail mask), is_average=False.
    N2, C2, D2, H2, W2 = 2, 4, 3, 5, 7
    p_bf = jax.random.normal(k3, (N2, C2, D2, H2, W2), dtype=jnp.bfloat16)
    g_bf = (jax.random.uniform(k4, (N2, C2, D2, H2, W2)) > 0.5).astype(jnp.bfloat16)
    out2 = jax.block_until_ready(dice_loss(p_bf, g_bf, "sigmoid", False))
    ref2 = _reference_dice_loss(p_bf, g_bf, "sigmoid", False)
    assert jnp.allclose(out2, ref2, atol=1e-4, rtol=1e-3), (out2, ref2)

    # Case 3: softmax activation path.
    out3 = jax.block_until_ready(dice_loss(predict, gt, "softmax", True))
    ref3 = _reference_dice_loss(predict, gt, "softmax", True)
    assert jnp.allclose(out3, ref3, atol=1e-5, rtol=1e-4), (out3, ref3)

    print("KERNEL_OK")
</pallas_src>

<mosaic_0001>
module attributes {stable_mosaic.version = 11 : i64} {
  func.func @_dice_partial_kernel(%arg0: i32, %arg1: i32, %arg2: memref<8x256xf32, #tpu.memory_space<vmem>>, %arg3: memref<8x256xf32, #tpu.memory_space<vmem>>, %arg4: memref<1x8x1xf32, #tpu.memory_space<vmem>>, %arg5: memref<1x8x1xf32, #tpu.memory_space<vmem>>, %arg6: memref<8x256xf32, #tpu.memory_space<vmem>>, %arg7: memref<8x256xf32, #tpu.memory_space<vmem>>) attributes {dimension_semantics = [#tpu.dimension_semantics<parallel>, #tpu.dimension_semantics<arbitrary>], iteration_bounds = array<i64: 1, 1>, scalar_prefetch = 0 : i64, scratch_operands = 2 : i64, tpu.core_type = #tpu.core_type<tc>, window_params = [{transform_indices = @transform_0, window_bounds = array<i64: 8, 256>}, {transform_indices = @transform_1, window_bounds = array<i64: 8, 256>}, {transform_indices = @transform_2, window_bounds = array<i64: 1, 8, 1>}, {transform_indices = @transform_3, window_bounds = array<i64: 1, 8, 1>}]} {
    %c0_i32 = arith.constant 0 : i32
    %0 = arith.cmpi eq, %arg1, %c0_i32 : i32
    %1 = arith.extui %0 : i1 to i32
    %c0_i32_0 = arith.constant 0 : i32
    %2 = arith.cmpi ne, %1, %c0_i32_0 : i32
    scf.if %2 {
      %cst_14 = arith.constant 0.000000e+00 : f32
      %23 = vector.broadcast %cst_14 : f32 to vector<8x256xf32>
      %c0_15 = arith.constant 0 : index
      %c0_16 = arith.constant 0 : index
      %24 = vector.load %arg6[%c0_15, %c0_16] : memref<8x256xf32, #tpu.memory_space<vmem>>, vector<8x256xf32>
      tpu.vector_store %arg6[%c0_15, %c0_16], %23 {strides = array<i32>} : memref<8x256xf32, #tpu.memory_space<vmem>>, vector<8x256xf32>,
      %cst_17 = arith.constant 0.000000e+00 : f32
      %25 = vector.broadcast %cst_17 : f32 to vector<8x256xf32>
      %c0_18 = arith.constant 0 : index
      %c0_19 = arith.constant 0 : index
      %26 = vector.load %arg7[%c0_18, %c0_19] : memref<8x256xf32, #tpu.memory_space<vmem>>, vector<8x256xf32>
      tpu.vector_store %arg7[%c0_18, %c0_19], %25 {strides = array<i32>} : memref<8x256xf32, #tpu.memory_space<vmem>>, vector<8x256xf32>,
    } else {
    }
    %c0 = arith.constant 0 : index
    %c0_1 = arith.constant 0 : index
    %3 = vector.load %arg2[%c0, %c0_1] : memref<8x256xf32, #tpu.memory_space<vmem>>, vector<8x256xf32>
    %c0_2 = arith.constant 0 : index
    %c0_3 = arith.constant 0 : index
    %4 = vector.load %arg3[%c0_2, %c0_3] : memref<8x256xf32, #tpu.memory_space<vmem>>, vector<8x256xf32>
    %5 = arith.negf %3 : vector<8x256xf32>
    %6 = math.exp %5 : vector<8x256xf32>
    %cst = arith.constant 1.000000e+00 : f32
    %7 = vector.broadcast %cst : f32 to vector<8x256xf32>
    %8 = arith.addf %7, %6 : vector<8x256xf32>
    %9 = arith.divf %7, %8 : vector<8x256xf32>
    %c0_4 = arith.constant 0 : index
    %c0_5 = arith.constant 0 : index
    %10 = vector.load %arg6[%c0_4, %c0_5] : memref<8x256xf32, #tpu.memory_space<vmem>>, vector<8x256xf32>
    %11 = arith.mulf %9, %4 : vector<8x256xf32>
    %12 = arith.addf %10, %11 : vector<8x256xf32>
    %c0_6 = arith.constant 0 : index
    %c0_7 = arith.constant 0 : index
    %13 = vector.load %arg6[%c0_6, %c0_7] : memref<8x256xf32, #tpu.memory_space<vmem>>, vector<8x256xf32>
    tpu.vector_store %arg6[%c0_6, %c0_7], %12 {strides = array<i32>} : memref<8x256xf32, #tpu.memory_space<vmem>>, vector<8x256xf32>,
    %c0_8 = arith.constant 0 : index
    %c0_9 = arith.constant 0 : index
    %14 = vector.load %arg7[%c0_8, %c0_9] : memref<8x256xf32, #tpu.memory_space<vmem>>, vector<8x256xf32>
    %15 = arith.mulf %9, %9 : vector<8x256xf32>
    %16 = arith.mulf %4, %4 : vector<8x256xf32>
    %17 = arith.addf %15, %16 : vector<8x256xf32>
    %18 = arith.addf %14, %17 : vector<8x256xf32>
    %c0_10 = arith.constant 0 : index
    %c0_11 = arith.constant 0 : index
    %19 = vector.load %arg7[%c0_10, %c0_11] : memref<8x256xf32, #tpu.memory_space<vmem>>, vector<8x256xf32>
    tpu.vector_store %arg7[%c0_10, %c0_11], %18 {strides = array<i32>} : memref<8x256xf32, #tpu.memory_space<vmem>>, vector<8x256xf32>,
    %c0_i32_12 = arith.constant 0 : i32
    %20 = arith.cmpi eq, %arg1, %c0_i32_12 : i32
    %21 = arith.extui %20 : i1 to i32
    %c0_i32_13 = arith.constant 0 : i32
    %22 = arith.cmpi ne, %21, %c0_i32_13 : i32
    scf.if %22 {
      %c0_14 = arith.constant 0 : index
      %c0_15 = arith.constant 0 : index
      %23 = vector.load %arg6[%c0_14, %c0_15] : memref<8x256xf32, #tpu.memory_space<vmem>>, vector<8x256xf32>
      %cst_16 = arith.constant dense<0.000000e+00> : vector<8xf32>
      %24 = vector.multi_reduction <add>, %23, %cst_16 [1] : vector<8x256xf32> to vector<8xf32>
      %25 = vector.shape_cast %24 : vector<8xf32> to vector<8x1xf32>
      %c0_17 = arith.constant 0 : index
      %c0_18 = arith.constant 0 : index
      %c0_19 = arith.constant 0 : index
      %26 = vector.load %arg4[%c0_17, %c0_18, %c0_19] : memref<1x8x1xf32, #tpu.memory_space<vmem>>, vector<1x8x1xf32>
      %27 = vector.shape_cast %26 : vector<1x8x1xf32> to vector<8x1xf32>
      %28 = vector.shape_cast %25 : vector<8x1xf32> to vector<1x8x1xf32>
      tpu.vector_store %arg4[%c0_17, %c0_18, %c0_19], %28 {strides = array<i32>} : memref<1x8x1xf32, #tpu.memory_space<vmem>>, vector<1x8x1xf32>,
      %c0_20 = arith.constant 0 : index
      %c0_21 = arith.constant 0 : index
      %29 = vector.load %arg7[%c0_20, %c0_21] : memref<8x256xf32, #tpu.memory_space<vmem>>, vector<8x256xf32>
      %cst_22 = arith.constant dense<0.000000e+00> : vector<8xf32>
      %30 = vector.multi_reduction <add>, %29, %cst_22 [1] : vector<8x256xf32> to vector<8xf32>
      %31 = vector.shape_cast %30 : vector<8xf32> to vector<8x1xf32>
      %c0_23 = arith.constant 0 : index
      %c0_24 = arith.constant 0 : index
      %c0_25 = arith.constant 0 : index
      %32 = vector.load %arg5[%c0_23, %c0_24, %c0_25] : memref<1x8x1xf32, #tpu.memory_space<vmem>>, vector<1x8x1xf32>
      %33 = vector.shape_cast %32 : vector<1x8x1xf32> to vector<8x1xf32>
      %34 = vector.shape_cast %31 : vector<8x1xf32> to vector<1x8x1xf32>
      tpu.vector_store %arg5[%c0_23, %c0_24, %c0_25], %34 {strides = array<i32>} : memref<1x8x1xf32, #tpu.memory_space<vmem>>, vector<1x8x1xf32>,
    } else {
    }
    return
  }
  func.func @transform_0(%arg0: i32, %arg1: i32) -> (i32, i32) {
    %c1_i32 = arith.constant 1 : i32
    %0 = arith.muli %arg0, %c1_i32 : i32
    %1 = arith.addi %0, %arg1 : i32
    %c0_i32 = arith.constant 0 : i32
    %c0_i32_0 = arith.constant 0 : i32
    return %c0_i32, %1 : i32, i32
  }
  func.func @transform_1(%arg0: i32, %arg1: i32) -> (i32, i32) {
    %c1_i32 = arith.constant 1 : i32
    %0 = arith.muli %arg0, %c1_i32 : i32
    %1 = arith.addi %0, %arg1 : i32
    %c0_i32 = arith.constant 0 : i32
    %c0_i32_0 = arith.constant 0 : i32
    return %c0_i32, %1 : i32, i32
  }
  func.func @transform_2(%arg0: i32, %arg1: i32) -> (i32, i32, i32) {
    %c0_i32 = arith.constant 0 : i32
    %c0_i32_0 = arith.constant 0 : i32
    %c0_i32_1 = arith.constant 0 : i32
    return %arg0, %c0_i32, %c0_i32_0 : i32, i32, i32
  }
  func.func @transform_3(%arg0: i32, %arg1: i32) -> (i32, i32, i32) {
    %c0_i32 = arith.constant 0 : i32
    %c0_i32_0 = arith.constant 0 : i32
    %c0_i32_1 = arith.constant 0 : i32
    return %arg0, %c0_i32, %c0_i32_0 : i32, i32, i32
  }
}

</mosaic_0001>

<llo_original>
// kernel: tpu_custom_call.1
$region0: #{tpu_custom_call.1}
  #allocation0 [shape = 'u32[]', space=smem, size = 0x4, offset = 0x4, fixed_abs, tag = 'smem constant byte address 0x4 - core index']
  #allocation1 [shape = 'u32[144,128]{1,0:T(1,128)}', space=vmem, size = 0x12000, scoped, tag = 'internal scratch']
  #allocation2 [shape = 'f32[8,256]{1,0:T(8,128)}', space=vmem, size = 0x2000, scoped, tag = 'scratch operand']
  #allocation3 [shape = 'f32[8,256]{1,0:T(8,128)}', space=vmem, size = 0x2000, scoped, tag = 'scratch operand']
  %s0 = inlined_call_operand.hbm [shape: f32[8,256], index: 0, kind: input, shape index: {}]
  %s1 = inlined_call_operand.hbm [shape: f32[8,256], index: 1, kind: input, shape index: {}]
  %s2 = inlined_call_operand.vmem [shape: f32[1,8,1], index: 2, kind: output, shape index: {0}]
  %s3 = inlined_call_operand.vmem [shape: f32[1,8,1], index: 3, kind: output, shape index: {1}]
  %4 = xla_tuple %s2, %s3
  %s5 = sld [smem:[#allocation0]]
  $region42: #{tpu_custom_call.1} parent=0
    _
  %s7 = ssub.s32 1, %s5
  %s8 = scalar_select 0, %s7, %s5
  $region1: #{tpu_custom_call.1} parent=0
    #allocation4 [shape = 'u8[8192]{0}', space=vmem, size = 0x2000, scoped, tag = 'input window, operand 0, single buffered']
    #allocation5 [shape = 's32[1]{0}', space=sflag, size = 0x4, scoped, tag = 'scoped memory for tpu_custom_call.1']
    #allocation6 [shape = 'u8[8192]{0}', space=vmem, size = 0x2000, scoped, tag = 'input window, operand 1, single buffered']
    #allocation7 [shape = 's32[1]{0}', space=sflag, size = 0x4, scoped, tag = 'scoped memory for tpu_custom_call.1']
    %9 = vsyncpa [#allocation5], 0
    %10 = vsyncpa [#allocation7], 0
    // Predicated region
    $region2: #{tpu_custom_call.1} parent=1 // pred_check
      _
    $region3: #{tpu_custom_call.1} parent=1 // pred_check_branch
      %12 = sbr.rel (0) target = $region5
    $region4: #{tpu_custom_call.1} parent=1 // pred_region
      %s13 = sadd.s32 0, 0
      %s14 = smul.u32 2, %s13
      %s16 = ssub.s32 256, 256
      %17 = vsyncadd [#allocation5], %s16
      %s18 = smul.addr %s14, 128
      %s19 = scalar_lea.hbm %s0, %s18
      %s21 = sshll.u32 [#allocation4], 4
      %s22 = int_to_ptr.vmem [resolvable:$true] %s21
      %24 = dma.hbm_to_vmem [thread:$0]  %s19, 256, %s22, [#allocation5]
    $region5: #{tpu_custom_call.1} parent=1 // pred_fallthru
      _
    // Predicated region
    $region6: #{tpu_custom_call.1} parent=1 // pred_check
      _
    $region7: #{tpu_custom_call.1} parent=1 // pred_check_branch
      %26 = sbr.rel (0) target = $region9
    $region8: #{tpu_custom_call.1} parent=1 // pred_region
      %s27 = sadd.s32 0, 0
      %s28 = smul.u32 2, %s27
      %s30 = ssub.s32 256, 256
      %31 = vsyncadd [#allocation7], %s30
      %s32 = smul.addr %s28, 128
      %s33 = scalar_lea.hbm %s1, %s32
      %s35 = sshll.u32 [#allocation6], 4
      %s36 = int_to_ptr.vmem [resolvable:$true] %s35
      %38 = dma.hbm_to_vmem [thread:$0]  %s33, 256, %s36, [#allocation7]
    $region9: #{tpu_custom_call.1} parent=1 // pred_fallthru
      _
    // Predicated region
    $region10: #{tpu_custom_call.1} parent=1 // pred_check
      _
    $region11: #{tpu_custom_call.1} parent=1 // pred_check_branch
      %40 = sbr.rel (0) target = $region13
    $region12: #{tpu_custom_call.1} parent=1 // pred_region
      %41 = dma.done [#allocation5], 256
    $region13: #{tpu_custom_call.1} parent=1 // pred_fallthru
      _
    // Predicated region
    $region14: #{tpu_custom_call.1} parent=1 // pred_check
      _
    $region15: #{tpu_custom_call.1} parent=1 // pred_check_branch
      %43 = sbr.rel (0) target = $region17
    $region16: #{tpu_custom_call.1} parent=1 // pred_region
      %44 = dma.done [#allocation7], 256
    $region17: #{tpu_custom_call.1} parent=1 // pred_fallthru
      _
    %s45 = sadd.s32 0, 0
    %s46 = smul.u32 2, %s45
    %s47 = sadd.s32 0, 0
    %s48 = smul.u32 2, %s47
    %p49 = scmp.eq.s32.totalorder 0, 0
    // Predicated region
    $region18: #{tpu_custom_call.1} parent=1 // pred_check
      %p50 = pneg %p49
    $region19: #{tpu_custom_call.1} parent=1 // pred_check_branch
      %52 = sbr.rel (%p50) target = $region21
    $region20: #{tpu_custom_call.1} parent=1 // pred_region
      %53 = vst [vmem:[#allocation2] sm:$0xff] 0.0
      %54 = vst [vmem:[#allocation2 + $0x8] sm:$0xff] 0.0
      %55 = vst [vmem:[#allocation3] sm:$0xff] 0.0
      %56 = vst [vmem:[#allocation3 + $0x8] sm:$0xff] 0.0
    $region21: #{tpu_custom_call.1} parent=1 // pred_fallthru
      _
    %v57 = vld [vmem:[#allocation4] sm:$0xff]
    %v58 = vld [vmem:[#allocation4 + $0x8] sm:$0xff]
    %v59 = vld [vmem:[#allocation6] sm:$0xff]
    %v60 = vld [vmem:[#allocation6 + $0x8] sm:$0xff]
    %v61 = vxor.u32 %v57, 2147483648
    %v62 = vxor.u32 %v58, 2147483648
    %v63 = vmul.f32 %v61, 1.442695
    %v64 = vpow.pop %v63
    %v65 = vmul.f32 %v62, 1.442695
    %v66 = vpow.pop %v65
    %v67 = vadd.f32 %v64, 1.0
    %v68 = vadd.f32 %v66, 1.0
    %v69 = vrcp.pop %v67
    %v70 = vmul.f32 1.0, %v69
    %v71 = vrcp.pop %v68
    %v72 = vmul.f32 1.0, %v71
    %v73 = vld [vmem:[#allocation2] sm:$0xff]
    %v74 = vld [vmem:[#allocation2 + $0x8] sm:$0xff]
    %v75 = vmul.f32 %v70, %v59
    %v76 = vmul.f32 %v72, %v60
    %v77 = vadd.f32 %v73, %v75
    %v78 = vadd.f32 %v74, %v76
    %79 = vst [vmem:[#allocation2] sm:$0xff] %v77
    %80 = vst [vmem:[#allocation2 + $0x8] sm:$0xff] %v78
    %v81 = vld [vmem:[#allocation3] sm:$0xff]
    %v82 = vld [vmem:[#allocation3 + $0x8] sm:$0xff]
    %v83 = vmul.f32 %v70, %v70
    %v84 = vmul.f32 %v72, %v72
    %v85 = vmul.f32 %v59, %v59
    %v86 = vmul.f32 %v60, %v60
    %v87 = vadd.f32 %v83, %v85
    %v88 = vadd.f32 %v84, %v86
    %v89 = vadd.f32 %v81, %v87
    %v90 = vadd.f32 %v82, %v88
    %91 = vst [vmem:[#allocation3] sm:$0xff] %v89
    %92 = vst [vmem:[#allocation3 + $0x8] sm:$0xff] %v90
    // Predicated region
    $region22: #{tpu_custom_call.1} parent=1 // pred_check
      %p93 = pneg %p49
    $region23: #{tpu_custom_call.1} parent=1 // pred_check_branch
      %95 = sbr.rel (%p93) target = $region25
    $region24: #{tpu_custom_call.1} parent=1 // pred_region
      %v96 = vld [vmem:[#allocation2] sm:$0xff]
      %v97 = vld [vmem:[#allocation2 + $0x8] sm:$0xff]
      %v98 = vadd.f32 %v96, %v97
      %99 = vadd.xlane.f32.xlu0 %v98
      %v100 = vpop.xlane.xlu0 %99
      %vm101 = vcmask 7168
      %102 = vst.msk [vmem:[%s2] sm:$0xff] %vm101, %v100
      %v103 = vld [vmem:[#allocation3] sm:$0xff]
      %v104 = vld [vmem:[#allocation3 + $0x8] sm:$0xff]
      %v105 = vadd.f32 %v103, %v104
      %106 = vadd.xlane.f32.xlu0 %v105
      %v107 = vpop.xlane.xlu0 %106
      %108 = vst.msk [vmem:[%s3] sm:$0xff] %vm101, %v107
    $region25: #{tpu_custom_call.1} parent=1 // pred_fallthru
      _
    // Predicated region
    $region26: #{tpu_custom_call.1} parent=1 // pred_check
      _
    $region27: #{tpu_custom_call.1} parent=1 // pred_check_branch
      %110 = sbr.rel (0) target = $region29
    $region28: #{tpu_custom_call.1} parent=1 // pred_region
      _
    $region29: #{tpu_custom_call.1} parent=1 // pred_fallthru
      _
    // Predicated region
    $region30: #{tpu_custom_call.1} parent=1 // pred_check
      _
    $region31: #{tpu_custom_call.1} parent=1 // pred_check_branch
      %112 = sbr.rel (0) target = $region33
    $region32: #{tpu_custom_call.1} parent=1 // pred_region
      _
    $region33: #{tpu_custom_call.1} parent=1 // pred_fallthru
      _
    // Predicated region
    $region34: #{tpu_custom_call.1} parent=1 // pred_check
      _
    $region35: #{tpu_custom_call.1} parent=1 // pred_check_branch
      %114 = sbr.rel (0) target = $region37
    $region36: #{tpu_custom_call.1} parent=1 // pred_region
      _
    $region37: #{tpu_custom_call.1} parent=1 // pred_fallthru
      _
    // Predicated region
    $region38: #{tpu_custom_call.1} parent=1 // pred_check
      _
    $region39: #{tpu_custom_call.1} parent=1 // pred_check_branch
      %116 = sbr.rel (0) target = $region41
    $region40: #{tpu_custom_call.1} parent=1 // pred_region
      _
    $region41: #{tpu_custom_call.1} parent=1 // pred_fallthru
      _
    %117 = vsyncpa [#allocation5], 1
    %118 = vsyncpa [#allocation7], 1

</llo_original>
